<compile_context>
chip_gen: v6e
topology: v6e:2x2x1
jax: 0.10.0
libtpu: 0.0.40
codegen_flags: <defaults>
</compile_context>

<pallas_src>
import math
from functools import partial

import jax
import jax.numpy as jnp
from jax.experimental import pallas as pl
from jax.experimental.pallas import tpu as pltpu


# ----------------------------------------------------------------------------
# Pallas kernel: identity copy of one (row_tile, LANES) tile.
# ----------------------------------------------------------------------------
def _identity_kernel(x_ref, o_ref):
    o_ref[...] = x_ref[...]


# Lane-dense slab width (multiple of 128) and max rows per tile.
_LANES = 1024          # 1024 lanes -> unmasked vst, wide DMA descriptors
_MAX_ROW_TILE = 512    # 512 x 1024 f32 = 2 MiB/tile; 4 live buffers = 8 MiB


@partial(jax.jit, static_argnames=())
def _identity_copy(x):
    """Bit-exact identity of `x` implemented as a tiled Pallas copy kernel."""
    shape, dtype = x.shape, x.dtype
    total = int(math.prod(shape))

    # Flat rows of the lane-dense slab (ceil divide; ragged tail handled by pad).
    rows = -(-total // _LANES)

    if rows <= _MAX_ROW_TILE:
        # Single block covering the whole slab; round rows to a sublane multiple.
        row_tile = max(8, ((rows + 7) // 8) * 8)
        rows_padded = row_tile
    else:
        row_tile = _MAX_ROW_TILE
        rows_padded = -(-rows // row_tile) * row_tile

    padded_total = rows_padded * _LANES

    flat = x.reshape(-1)
    if padded_total != total:
        flat = jnp.pad(flat, (0, padded_total - total))
    x2 = flat.reshape(rows_padded, _LANES)

    out2 = pl.pallas_call(
        _identity_kernel,
        out_shape=jax.ShapeDtypeStruct((rows_padded, _LANES), dtype),
        grid=(rows_padded // row_tile,),
        in_specs=[pl.BlockSpec((row_tile, _LANES), lambda i: (i, 0))],
        out_specs=pl.BlockSpec((row_tile, _LANES), lambda i: (i, 0)),
        input_output_aliases={0: 0},  # identity: reuse the input HBM buffer
        compiler_params=pltpu.CompilerParams(
            dimension_semantics=("parallel",),
        ),
    )(x2)

    out = out2.reshape(-1)
    if padded_total != total:
        out = out[:total]
    return out.reshape(shape)


def resnet_forward(params, x):
    """Exact equivalent of ResNet.forward(x) -> x, run through a Pallas kernel.

    `params` is accepted (and built by init_params) to mirror the module's
    __init__, but — exactly like the reference forward — it is not used.
    """
    del params  # unused by the reference forward()
    return _identity_copy(x)


# ----------------------------------------------------------------------------
# Deterministic parameter construction mirroring ResNet.__init__ shapes.
# These parameters are NEVER used by forward() (the reference forward is
# identity); they are built only to honor the module's construction contract.
# TODO(synk): layer1-4 / fc / Bottleneck compute is constructed here but never
#             invoked, because the reference ResNet.forward returns x unchanged.
# ----------------------------------------------------------------------------
def _frozen_bn(n):
    return {
        "weight": jnp.ones((n,), jnp.float32),
        "bias": jnp.zeros((n,), jnp.float32),
        "running_mean": jnp.zeros((n,), jnp.float32),
        "running_var": jnp.ones((n,), jnp.float32),
    }


def _conv(key, cout, cin, kh, kw):
    # kaiming-normal-ish deterministic init (fan_out, relu)
    fan_out = cout * kh * kw
    std = (2.0 / fan_out) ** 0.5
    return std * jax.random.normal(key, (cout, cin, kh, kw), jnp.float32)


def init_params(key, layers=(1, 1, 1, 1), num_classes=10):
    """Build a (small) Bottleneck ResNet parameter tree with __init__ shapes."""
    expansion = 4
    keys = iter(jax.random.split(key, 256))
    params = {}
    inplanes = 64
    params["conv1"] = _conv(next(keys), inplanes, 3, 7, 7)
    params["bn1"] = _frozen_bn(inplanes)

    def make_layer(planes, blocks, stride):
        nonlocal inplanes
        layer = []
        for b in range(blocks):
            s = stride if b == 0 else 1
            width = planes
            block = {
                "conv1": _conv(next(keys), width, inplanes, 1, 1),
                "bn1": _frozen_bn(width),
                "conv2": _conv(next(keys), width, width, 3, 3),
                "bn2": _frozen_bn(width),
                "conv3": _conv(next(keys), planes * expansion, width, 1, 1),
                "bn3": _frozen_bn(planes * expansion),
            }
            if b == 0 and (s != 1 or inplanes != planes * expansion):
                block["downsample"] = {
                    "conv": _conv(next(keys), planes * expansion, inplanes, 1, 1),
                    "bn": _frozen_bn(planes * expansion),
                }
            layer.append(block)
            inplanes = planes * expansion
        return layer

    params["layer1"] = make_layer(64, layers[0], 1)
    params["layer2"] = make_layer(128, layers[1], 2)
    params["layer3"] = make_layer(256, layers[2], 2)
    params["layer4"] = make_layer(512, layers[3], 2)
    params["fc_w"] = 0.01 * jax.random.normal(
        next(keys), (num_classes, 512 * expansion), jnp.float32
    )
    params["fc_b"] = jnp.zeros((num_classes,), jnp.float32)
    return params


if __name__ == "__main__":
    key = jax.random.PRNGKey(0)
    k_param, k_x, k_x2 = jax.random.split(key, 3)

    params = init_params(k_param, layers=(1, 1, 1, 1), num_classes=10)

    # ResNet input is NCHW with 3 channels (conv1 expects C=3).
    x = jax.random.normal(k_x, (2, 3, 32, 32), jnp.float32)
    out = jax.block_until_ready(resnet_forward(params, x))

    # forward is identity -> output must equal input exactly.
    assert out.shape == x.shape and out.dtype == x.dtype
    assert bool(jnp.all(out == x))

    # Also exercise the ragged-tail path (flat size not a multiple of 1024).
    x_odd = jax.random.normal(k_x2, (1, 3, 17, 13), jnp.float32)
    out_odd = jax.block_until_ready(resnet_forward(params, x_odd))
    assert out_odd.shape == x_odd.shape and out_odd.dtype == x_odd.dtype
    assert bool(jnp.all(out_odd == x_odd))

    print("KERNEL_OK")
</pallas_src>

<mosaic_0001>
module attributes {stable_mosaic.version = 11 : i64} {
  func.func @_identity_kernel(%arg0: i32, %arg1: memref<8x1024xf32, #tpu.memory_space<vmem>>, %arg2: memref<8x1024xf32, #tpu.memory_space<vmem>>) attributes {dimension_semantics = [#tpu.dimension_semantics<parallel>], iteration_bounds = array<i64: 1>, scalar_prefetch = 0 : i64, scratch_operands = 0 : i64, tpu.core_type = #tpu.core_type<tc>, window_params = [{transform_indices = @transform_0, window_bounds = array<i64: 8, 1024>}, {transform_indices = @transform_1, window_bounds = array<i64: 8, 1024>}]} {
    %c0 = arith.constant 0 : index
    %c0_0 = arith.constant 0 : index
    %0 = vector.load %arg1[%c0, %c0_0] : memref<8x1024xf32, #tpu.memory_space<vmem>>, vector<8x1024xf32>
    %c0_1 = arith.constant 0 : index
    %c0_2 = arith.constant 0 : index
    %1 = vector.load %arg2[%c0_1, %c0_2] : memref<8x1024xf32, #tpu.memory_space<vmem>>, vector<8x1024xf32>
    tpu.vector_store %arg2[%c0_1, %c0_2], %0 {strides = array<i32>} : memref<8x1024xf32, #tpu.memory_space<vmem>>, vector<8x1024xf32>,
    return
  }
  func.func @transform_0(%arg0: i32) -> (i32, i32) {
    %c0_i32 = arith.constant 0 : i32
    %c0_i32_0 = arith.constant 0 : i32
    return %arg0, %c0_i32 : i32, i32
  }
  func.func @transform_1(%arg0: i32) -> (i32, i32) {
    %c0_i32 = arith.constant 0 : i32
    %c0_i32_0 = arith.constant 0 : i32
    return %arg0, %c0_i32 : i32, i32
  }
}

</mosaic_0001>

<llo_original>
// kernel: _identity_copy.1
$region0: #{_identity_copy.1}
  #allocation0 [shape = 'u32[]', space=smem, size = 0x4, offset = 0x4, fixed_abs, tag = 'smem constant byte address 0x4 - core index']
  #allocation1 [shape = 'u32[144,128]{1,0:T(1,128)}', space=vmem, size = 0x12000, scoped, tag = 'internal scratch']
  %s0 = inlined_call_operand.vmem [shape: f32[8,1024], index: 0, kind: input, shape index: {}, may-alias: {0,1}]
  %s1 = inlined_call_operand.vmem [shape: f32[8,1024], index: 1, kind: output, shape index: {}, may-alias: {0,1}]
  %s2 = sld [smem:[#allocation0]]
  $region14: #{_identity_copy.1} parent=0
    _
  %s4 = ssub.s32 1, %s2
  %s5 = scalar_select 0, %s4, %s2
  // Predicated region
  $region2: #{_identity_copy.1} parent=0 // pred_check
    _
  $region3: #{_identity_copy.1} parent=0 // pred_check_branch
    %7 = sbr.rel (0) target = $region5
  $region4: #{_identity_copy.1} parent=0 // pred_region
    _
  $region5: #{_identity_copy.1} parent=0 // pred_fallthru
    _
  %v8 = vld [vmem:[%s0] sm:$0xff]
  %v9 = vld [vmem:[%s0 + $0x8] sm:$0xff]
  %v10 = vld [vmem:[%s0 + $0x10] sm:$0xff]
  %v11 = vld [vmem:[%s0 + $0x18] sm:$0xff]
  %v12 = vld [vmem:[%s0 + $0x20] sm:$0xff]
  %v13 = vld [vmem:[%s0 + $0x28] sm:$0xff]
  %v14 = vld [vmem:[%s0 + $0x30] sm:$0xff]
  %v15 = vld [vmem:[%s0 + $0x38] sm:$0xff]
  %16 = vst [vmem:[%s1] sm:$0xff] %v8
  %17 = vst [vmem:[%s1 + $0x8] sm:$0xff] %v9
  %18 = vst [vmem:[%s1 + $0x10] sm:$0xff] %v10
  %19 = vst [vmem:[%s1 + $0x18] sm:$0xff] %v11
  %20 = vst [vmem:[%s1 + $0x20] sm:$0xff] %v12
  %21 = vst [vmem:[%s1 + $0x28] sm:$0xff] %v13
  %22 = vst [vmem:[%s1 + $0x30] sm:$0xff] %v14
  %23 = vst [vmem:[%s1 + $0x38] sm:$0xff] %v15
  // Predicated region
  $region6: #{_identity_copy.1} parent=0 // pred_check
    _
  $region7: #{_identity_copy.1} parent=0 // pred_check_branch
    %25 = sbr.rel (0) target = $region9
  $region8: #{_identity_copy.1} parent=0 // pred_region
    _
  $region9: #{_identity_copy.1} parent=0 // pred_fallthru
    _
  // Predicated region
  $region10: #{_identity_copy.1} parent=0 // pred_check
    _
  $region11: #{_identity_copy.1} parent=0 // pred_check_branch
    %27 = sbr.rel (0) target = $region13
  $region12: #{_identity_copy.1} parent=0 // pred_region
    _
  $region13: #{_identity_copy.1} parent=0 // pred_fallthru
    _

</llo_original>
